<compile_context>
chip_gen: v7x
topology: tpu7x:2x2x1
jax: 0.10.0
libtpu: 0.0.40
codegen_flags: <defaults>
</compile_context>

<pallas_src>
import functools

import jax
import jax.numpy as jnp
from jax import lax
from jax.experimental import pallas as pl
from jax.experimental.pallas import tpu as pltpu

BN_EPS = 1e-5


def _round_up(x, m):
    return (x + m - 1) // m * m


# -----------------------------------------------------------------------------
# Pass 1: training-mode BatchNorm batch statistics.
#   grid = (2, n_tiles), phase outermost, strictly sequential.
#   phase 0: accumulate sum / sum^2 of z = ReLU(x @ We + be)          (BN1 stats)
#   phase 1: recompute z, apply BN1, accumulate sum / sum^2 of
#            h1 = ReLU(BN1(z) @ W1 + b1)                              (BN2 stats)
#   The four accumulators are OUTPUTS with constant-index BlockSpecs -> VMEM-resident
#   for the whole grid, flushed to HBM exactly once at the end.
# -----------------------------------------------------------------------------
def _stats_kernel(
    x_ref, we_ref, be_ref, g1_ref, bt1_ref, w1_ref, b1_ref,
    sum1_ref, sq1_ref, sum2_ref, sq2_ref,
    *, true_b, tb, compute_dtype, mask_rows, x_resident):
    phase = pl.program_id(0)
    tile = pl.program_id(1)

    if x_resident:
        # x is one big resident VMEM block; slice the current batch tile out of it.
        start = pl.multiple_of(tile * tb, 8)
        x = x_ref[pl.ds(start, tb), :]
    else:
        x = x_ref[...]

    # Row-validity mask (only if the batch was padded): padded rows must not
    # contribute to the batch statistics.
    if mask_rows:
        row = tile * tb + lax.broadcasted_iota(jnp.int32, (tb, 1), 0)
        valid = (row < true_b).astype(jnp.float32)            # (TB, 1)
    else:
        valid = None

    # encoder: Linear(dim_x, dim_z) + ReLU (f32 accumulation)
    z = jnp.maximum(
        jnp.dot(x, we_ref[...], preferred_element_type=jnp.float32) + be_ref[...],
        0.0)

    @pl.when(jnp.logical_and(phase == 0, tile == 0))
    def _():
        sum1_ref[...] = jnp.zeros_like(sum1_ref)
        sq1_ref[...] = jnp.zeros_like(sq1_ref)

    @pl.when(phase == 0)
    def _():
        zm = z * valid if mask_rows else z
        sum1_ref[...] += jnp.sum(zm, axis=0, keepdims=True)
        sq1_ref[...] += jnp.sum(zm * zm, axis=0, keepdims=True)

    @pl.when(phase == 1)
    def _():
        inv_b = jnp.float32(1.0 / true_b)
        mu1 = sum1_ref[...] * inv_b
        var1 = sq1_ref[...] * inv_b - mu1 * mu1
        scale1 = g1_ref[...] * lax.rsqrt(var1 + BN_EPS)
        shift1 = bt1_ref[...] - mu1 * scale1
        a = z * scale1 + shift1                                # BN1 as one FMA

        h1 = jnp.maximum(
            jnp.dot(a.astype(compute_dtype), w1_ref[...],
                    preferred_element_type=jnp.float32) + b1_ref[...], 0.0)

        @pl.when(tile == 0)
        def _():
            sum2_ref[...] = jnp.zeros_like(sum2_ref)
            sq2_ref[...] = jnp.zeros_like(sq2_ref)

        hm = h1 * valid if mask_rows else h1
        sum2_ref[...] += jnp.sum(hm, axis=0, keepdims=True)
        sq2_ref[...] += jnp.sum(hm * hm, axis=0, keepdims=True)


# -----------------------------------------------------------------------------
# Pass 2: full forward with the BN affines pre-folded into W1/b1 and W2/b2.
#   Stateless per batch tile -> "parallel" grid axis (2-TC sharding on v7x).
# -----------------------------------------------------------------------------
def _forward_kernel(
    x_ref, we_ref, be_ref, w1_ref, b1_ref, w2_ref, b2_ref, w3_ref, b3_ref,
    out_ref, *, compute_dtype):
    z = jnp.maximum(
        jnp.dot(x_ref[...], we_ref[...], preferred_element_type=jnp.float32)
        + be_ref[...], 0.0)
    h1 = jnp.maximum(
        jnp.dot(z.astype(compute_dtype), w1_ref[...],
                preferred_element_type=jnp.float32) + b1_ref[...], 0.0)
    h2 = jnp.maximum(
        jnp.dot(h1.astype(compute_dtype), w2_ref[...],
                preferred_element_type=jnp.float32) + b2_ref[...], 0.0)
    logits = jnp.dot(h2.astype(compute_dtype), w3_ref[...],
                     preferred_element_type=jnp.float32) + b3_ref[...]
    out_ref[...] = logits.astype(out_ref.dtype)


def semi_sl_forward(x, params, *, tile_b=1024, use_bf16=True,
                    logits_dtype=jnp.float32,
                    x_resident_budget_bytes=16 * 1024 * 1024):
    """x: [B, dim_x] float32.  params: dict of f32 weights/biases (see init_params)."""
    B, dim_x = x.shape
    dim_z = params["we"].shape[1]
    hid = params["w1"].shape[1]
    dim_y = params["w3"].shape[1]

    cdt = jnp.bfloat16 if use_bf16 else jnp.float32
    x_itemsize = jnp.dtype(cdt).itemsize

    # Lane-pad every feature dim to a multiple of 128 (lane-dense matmuls, unmasked
    # output stores).  Batch padded to a multiple of the batch tile (sublane mult of 8).
    DX, DZ, DH, DY = (_round_up(d, 128) for d in (dim_x, dim_z, hid, dim_y))
    TB = min(_round_up(tile_b, 8), _round_up(B, 8))
    BP = _round_up(B, TB)
    n_tiles = BP // TB
    mask_rows = BP != B

    def pad_mat_f32(w, r, c):
        return jnp.zeros((r, c), jnp.float32).at[: w.shape[0], : w.shape[1]].set(
            w.astype(jnp.float32))

    def pad_row(v, c):
        return jnp.zeros((1, c), jnp.float32).at[:, : v.shape[1]].set(
            v.astype(jnp.float32))

    xp = jnp.zeros((BP, DX), cdt).at[:B, :dim_x].set(x.astype(cdt))

    we = pad_mat_f32(params["we"], DX, DZ).astype(cdt)
    be = pad_row(params["be"], DZ)
    g1 = pad_row(params["g1"], DZ)
    bt1 = pad_row(params["bt1"], DZ)
    w1_f32 = pad_mat_f32(params["w1"], DZ, DH)
    b1 = pad_row(params["b1"], DH)
    g2 = pad_row(params["g2"], DH)
    bt2 = pad_row(params["bt2"], DH)
    w2_f32 = pad_mat_f32(params["w2"], DH, DZ)
    b2 = pad_row(params["b2"], DZ)
    w3 = pad_mat_f32(params["w3"], DZ, DY).astype(cdt)
    b3 = pad_row(params["b3"], DY)

    # ------------------------- pass 1: BN batch statistics -------------------------
    # Keep x fully VMEM-resident when it fits (x is double-buffered by the pipeline,
    # hence the factor 2 in the budget check); saves one of the two x HBM reads.
    x_resident = 2 * BP * DX * x_itemsize <= x_resident_budget_bytes
    if x_resident:
        x_spec_stats = pl.BlockSpec((BP, DX), lambda p, t: (0, 0))
    else:
        x_spec_stats = pl.BlockSpec((TB, DX), lambda p, t: (t, 0))

    stats_args = (xp, we, be, g1, bt1, w1_f32.astype(cdt), b1)
    resident2 = lambda a: pl.BlockSpec(a.shape, lambda p, t: (0, 0))
    stats_in_specs = [x_spec_stats] + [resident2(a) for a in stats_args[1:]]
    stats_out_specs = [
        pl.BlockSpec((1, DZ), lambda p, t: (0, 0)),
        pl.BlockSpec((1, DZ), lambda p, t: (0, 0)),
        pl.BlockSpec((1, DH), lambda p, t: (0, 0)),
        pl.BlockSpec((1, DH), lambda p, t: (0, 0)),
    ]
    stats_out_shape = (
        jax.ShapeDtypeStruct((1, DZ), jnp.float32),
        jax.ShapeDtypeStruct((1, DZ), jnp.float32),
        jax.ShapeDtypeStruct((1, DH), jnp.float32),
        jax.ShapeDtypeStruct((1, DH), jnp.float32),
    )

    stats_flops = 2 * BP * (2 * DX * DZ + DZ * DH) + 8 * BP * (DZ + DH)
    stats_bytes = ((1 if x_resident else 2) * xp.size * xp.dtype.itemsize
                   + sum(a.size * a.dtype.itemsize for a in stats_args[1:])
                   + 2 * (DZ + DH) * 4)

    stats_kernel = functools.partial(
        _stats_kernel, true_b=B, tb=TB, compute_dtype=cdt,
        mask_rows=mask_rows, x_resident=x_resident)

    sum1, sq1, sum2, sq2 = pl.pallas_call(
        stats_kernel,
        out_shape=stats_out_shape,
        grid_spec=pltpu.PrefetchScalarGridSpec(
            num_scalar_prefetch=0,
            grid=(2, n_tiles),                      # (phase, batch tile) — phase outermost
            in_specs=stats_in_specs,
            out_specs=stats_out_specs,
        ),
        compiler_params=pltpu.CompilerParams(
            # Both axes sequential: stats accumulate across tiles and phase 1 reads
            # phase 0's accumulators.
            dimension_semantics=("arbitrary", "arbitrary"),
            vmem_limit_bytes=32 * 1024 * 1024,
        ),
        cost_estimate=pl.CostEstimate(
            flops=int(stats_flops),
            transcendentals=int(n_tiles * DZ),
            bytes_accessed=int(stats_bytes)),
    )(*stats_args)

    # --------------- fold BN affines into the following Linears (tiny XLA ops) -----
    inv_b = 1.0 / B
    mu1 = sum1 * inv_b
    var1 = sq1 * inv_b - mu1 * mu1                 # biased batch variance
    scale1 = g1 * lax.rsqrt(var1 + BN_EPS)
    shift1 = bt1 - mu1 * scale1
    w1f = (w1_f32 * scale1.reshape(DZ, 1)).astype(cdt)
    b1f = shift1 @ w1_f32 + b1

    mu2 = sum2 * inv_b
    var2 = sq2 * inv_b - mu2 * mu2
    scale2 = g2 * lax.rsqrt(var2 + BN_EPS)
    shift2 = bt2 - mu2 * scale2
    w2f = (w2_f32 * scale2.reshape(DH, 1)).astype(cdt)
    b2f = shift2 @ w2_f32 + b2

    # ------------------------- pass 2: full forward (parallel tiles) ---------------
    fwd_args = (xp, we, be, w1f, b1f, w2f, b2f, w3, b3)
    x_spec = pl.BlockSpec((TB, DX), lambda t: (t, 0))
    out_spec = pl.BlockSpec((TB, DY), lambda t: (t, 0))
    resident1 = lambda a: pl.BlockSpec(a.shape, lambda t: (0, 0))
    fwd_in_specs = [x_spec] + [resident1(a) for a in fwd_args[1:]]

    out_itemsize = jnp.dtype(logits_dtype).itemsize
    fwd_flops = (2 * BP * (DX * DZ + DZ * DH + DH * DZ + DZ * DY)
                 + 2 * BP * (2 * DZ + DH + DY))
    fwd_bytes = (xp.size * xp.dtype.itemsize
                 + sum(a.size * a.dtype.itemsize for a in fwd_args[1:])
                 + BP * DY * out_itemsize)

    out = pl.pallas_call(
        functools.partial(_forward_kernel, compute_dtype=cdt),
        out_shape=jax.ShapeDtypeStruct((BP, DY), logits_dtype),
        grid_spec=pltpu.PrefetchScalarGridSpec(
            num_scalar_prefetch=0,
            grid=(n_tiles,),
            in_specs=fwd_in_specs,
            out_specs=out_spec,
        ),
        compiler_params=pltpu.CompilerParams(
            # No cross-tile state -> shardable across v7x's two TensorCores.
            dimension_semantics=("parallel",),
            vmem_limit_bytes=32 * 1024 * 1024,
        ),
        cost_estimate=pl.CostEstimate(
            flops=int(fwd_flops),
            transcendentals=0,
            bytes_accessed=int(fwd_bytes)),
    )(*fwd_args)
    return out[:B, :dim_y].astype(jnp.float32)


def init_params(key, dim_x, dim_z, dim_y):
    ks = jax.random.split(key, 8)
    scale = 0.1
    return {
        # encoder Linear(dim_x, dim_z)  (weights stored [in, out])
        "we": scale * jax.random.normal(ks[0], (dim_x, dim_z), jnp.float32),
        "be": scale * jax.random.normal(ks[1], (1, dim_z), jnp.float32),
        # BatchNorm1d(dim_z): gamma=1, beta=0 (PyTorch default init)
        "g1": jnp.ones((1, dim_z), jnp.float32),
        "bt1": jnp.zeros((1, dim_z), jnp.float32),
        # Linear(dim_z, 2*dim_z)
        "w1": scale * jax.random.normal(ks[2], (dim_z, 2 * dim_z), jnp.float32),
        "b1": scale * jax.random.normal(ks[3], (1, 2 * dim_z), jnp.float32),
        # BatchNorm1d(2*dim_z)
        "g2": jnp.ones((1, 2 * dim_z), jnp.float32),
        "bt2": jnp.zeros((1, 2 * dim_z), jnp.float32),
        # Linear(2*dim_z, dim_z)
        "w2": scale * jax.random.normal(ks[4], (2 * dim_z, dim_z), jnp.float32),
        "b2": scale * jax.random.normal(ks[5], (1, dim_z), jnp.float32),
        # Linear(dim_z, dim_y)
        "w3": scale * jax.random.normal(ks[6], (dim_z, dim_y), jnp.float32),
        "b3": scale * jax.random.normal(ks[7], (1, dim_y), jnp.float32),
    }


def reference_forward(x, p):
    """Pure-JAX f32 reference (training-mode BatchNorm, biased batch variance)."""
    z = jnp.maximum(x @ p["we"] + p["be"], 0.0)
    mu1 = jnp.mean(z, axis=0, keepdims=True)
    v1 = jnp.mean((z - mu1) ** 2, axis=0, keepdims=True)
    a = p["g1"] * (z - mu1) / jnp.sqrt(v1 + BN_EPS) + p["bt1"]
    h1 = jnp.maximum(a @ p["w1"] + p["b1"], 0.0)
    mu2 = jnp.mean(h1, axis=0, keepdims=True)
    v2 = jnp.mean((h1 - mu2) ** 2, axis=0, keepdims=True)
    b = p["g2"] * (h1 - mu2) / jnp.sqrt(v2 + BN_EPS) + p["bt2"]
    h2 = jnp.maximum(b @ p["w2"] + p["b2"], 0.0)
    return h2 @ p["w3"] + p["b3"]


if __name__ == "__main__":
    key = jax.random.PRNGKey(0)
    kx1, kx2, kp = jax.random.split(key, 3)

    dim_x, dim_z, dim_y = 32, 32, 8
    params = init_params(kp, dim_x, dim_z, dim_y)

    # 1) Single tile, f32 matmul path, VMEM-resident x in the stats pass:
    #    tight semantic check vs. the reference.
    x8 = jax.random.normal(kx1, (8, dim_x), jnp.float32)
    out8 = semi_sl_forward(x8, params, use_bf16=False)
    jax.block_until_ready(out8)
    ref8 = reference_forward(x8, params)
    assert out8.shape == (8, dim_y)
    assert jnp.allclose(out8, ref8, atol=1e-3, rtol=1e-3), "f32 single-tile mismatch"

    # 2) Multi-tile + padded batch (B=20, TB=8 -> 3 tiles, 4 padded rows), f32 path,
    #    forcing the tiled (non-resident) x path in the stats kernel: exercises global
    #    BN statistics across tiles, the row mask, and both x-spec variants.
    x20 = jax.random.normal(kx2, (20, dim_x), jnp.float32)
    out20 = semi_sl_forward(x20, params, tile_b=8, use_bf16=False,
                            x_resident_budget_bytes=0)
    jax.block_until_ready(out20)
    ref20 = reference_forward(x20, params)
    assert out20.shape == (20, dim_y)
    assert jnp.allclose(out20, ref20, atol=1e-3, rtol=1e-3), "f32 multi-tile mismatch"

    # 3) bf16 matmul path (recommended on v6e/v7x), resident x, multi-tile + mask:
    #    looser tolerance for bf16 rounding.
    out_bf16 = semi_sl_forward(x20, params, tile_b=8, use_bf16=True)
    jax.block_until_ready(out_bf16)
    assert jnp.allclose(out_bf16, ref20, atol=5e-2, rtol=5e-2), "bf16 path mismatch"

    print("KERNEL_OK")
</pallas_src>

<mosaic_0001>
module attributes {stable_mosaic.version = 11 : i64} {
  func.func @_stats_kernel(%arg0: i32, %arg1: i32, %arg2: memref<8x128xf32, #tpu.memory_space<vmem>>, %arg3: memref<128x128xf32, #tpu.memory_space<vmem>>, %arg4: memref<1x128xf32, #tpu.memory_space<vmem>>, %arg5: memref<1x128xf32, #tpu.memory_space<vmem>>, %arg6: memref<1x128xf32, #tpu.memory_space<vmem>>, %arg7: memref<128x128xf32, #tpu.memory_space<vmem>>, %arg8: memref<1x128xf32, #tpu.memory_space<vmem>>, %arg9: memref<1x128xf32, #tpu.memory_space<vmem>>, %arg10: memref<1x128xf32, #tpu.memory_space<vmem>>, %arg11: memref<1x128xf32, #tpu.memory_space<vmem>>, %arg12: memref<1x128xf32, #tpu.memory_space<vmem>>) attributes {dimension_semantics = [#tpu.dimension_semantics<arbitrary>, #tpu.dimension_semantics<arbitrary>], iteration_bounds = array<i64: 2, 1>, scalar_prefetch = 0 : i64, scratch_operands = 0 : i64, tpu.core_type = #tpu.core_type<tc>, window_params = [{pipeline_mode = #tpu.pipeline_mode<synchronous>, transform_indices = @transform_0, window_bounds = array<i64: 8, 128>}, {pipeline_mode = #tpu.pipeline_mode<synchronous>, transform_indices = @transform_1, window_bounds = array<i64: 128, 128>}, {pipeline_mode = #tpu.pipeline_mode<synchronous>, transform_indices = @transform_2, window_bounds = array<i64: 1, 128>}, {pipeline_mode = #tpu.pipeline_mode<synchronous>, transform_indices = @transform_3, window_bounds = array<i64: 1, 128>}, {pipeline_mode = #tpu.pipeline_mode<synchronous>, transform_indices = @transform_4, window_bounds = array<i64: 1, 128>}, {pipeline_mode = #tpu.pipeline_mode<synchronous>, transform_indices = @transform_5, window_bounds = array<i64: 128, 128>}, {pipeline_mode = #tpu.pipeline_mode<synchronous>, transform_indices = @transform_6, window_bounds = array<i64: 1, 128>}, {pipeline_mode = #tpu.pipeline_mode<synchronous>, transform_indices = @transform_7, window_bounds = array<i64: 1, 128>}, {pipeline_mode = #tpu.pipeline_mode<synchronous>, transform_indices = @transform_8, window_bounds = array<i64: 1, 128>}, {pipeline_mode = #tpu.pipeline_mode<synchronous>, transform_indices = @transform_9, window_bounds = array<i64: 1, 128>}, {pipeline_mode = #tpu.pipeline_mode<synchronous>, transform_indices = @transform_10, window_bounds = array<i64: 1, 128>}]} {
    %c8_i32 = arith.constant 8 : i32
    %0 = arith.muli %arg1, %c8_i32 : i32
    %1 = tpu.assume_multiple %0, 8 : i32
    %2 = arith.index_cast %1 : i32 to index
    %c0 = arith.constant 0 : index
    %3 = vector.load %arg2[%2, %c0] : memref<8x128xf32, #tpu.memory_space<vmem>>, vector<8x128xf32>
    %c0_0 = arith.constant 0 : index
    %c0_1 = arith.constant 0 : index
    %4 = vector.load %arg3[%c0_0, %c0_1] : memref<128x128xf32, #tpu.memory_space<vmem>>, vector<128x128xf32>
    %cst = arith.constant dense<0.000000e+00> : vector<8x128xf32>
    %5 = tpu.matmul %3, %4, %cst {dimension_numbers = #tpu.dot_dimension_numbers<[1], [0], [0], [1], [0, 0, 1, 1], [], []>} : vector<8x128xf32>, vector<128x128xf32>, vector<8x128xf32> -> vector<8x128xf32>
    %c0_2 = arith.constant 0 : index
    %c0_3 = arith.constant 0 : index
    %6 = vector.load %arg4[%c0_2, %c0_3] : memref<1x128xf32, #tpu.memory_space<vmem>>, vector<1x128xf32>
    %7 = vector.broadcast %6 : vector<1x128xf32> to vector<8x128xf32>
    %8 = arith.addf %5, %7 : vector<8x128xf32>
    %cst_4 = arith.constant 0.000000e+00 : f32
    %9 = vector.broadcast %cst_4 : f32 to vector<8x128xf32>
    %10 = arith.maximumf %8, %9 : vector<8x128xf32>
    %c0_i32 = arith.constant 0 : i32
    %11 = arith.cmpi eq, %arg0, %c0_i32 : i32
    %c0_i32_5 = arith.constant 0 : i32
    %12 = arith.cmpi eq, %arg1, %c0_i32_5 : i32
    %13 = arith.andi %11, %12 : i1
    %14 = arith.extui %13 : i1 to i32
    %c0_i32_6 = arith.constant 0 : i32
    %15 = arith.cmpi ne, %14, %c0_i32_6 : i32
    scf.if %15 {
      %cst_10 = arith.constant 0.000000e+00 : f32
      %22 = vector.broadcast %cst_10 : f32 to vector<1x128xf32>
      %c0_11 = arith.constant 0 : index
      %c0_12 = arith.constant 0 : index
      %23 = vector.load %arg9[%c0_11, %c0_12] : memref<1x128xf32, #tpu.memory_space<vmem>>, vector<1x128xf32>
      tpu.vector_store %arg9[%c0_11, %c0_12], %22 {strides = array<i32>} : memref<1x128xf32, #tpu.memory_space<vmem>>, vector<1x128xf32>,
      %cst_13 = arith.constant 0.000000e+00 : f32
      %24 = vector.broadcast %cst_13 : f32 to vector<1x128xf32>
      %c0_14 = arith.constant 0 : index
      %c0_15 = arith.constant 0 : index
      %25 = vector.load %arg10[%c0_14, %c0_15] : memref<1x128xf32, #tpu.memory_space<vmem>>, vector<1x128xf32>
      tpu.vector_store %arg10[%c0_14, %c0_15], %24 {strides = array<i32>} : memref<1x128xf32, #tpu.memory_space<vmem>>, vector<1x128xf32>,
    } else {
    }
    %c0_i32_7 = arith.constant 0 : i32
    %16 = arith.cmpi eq, %arg0, %c0_i32_7 : i32
    %17 = arith.extui %16 : i1 to i32
    %c0_i32_8 = arith.constant 0 : i32
    %18 = arith.cmpi ne, %17, %c0_i32_8 : i32
    scf.if %18 {
      %c0_10 = arith.constant 0 : index
      %c0_11 = arith.constant 0 : index
      %22 = vector.load %arg9[%c0_10, %c0_11] : memref<1x128xf32, #tpu.memory_space<vmem>>, vector<1x128xf32>
      %cst_12 = arith.constant dense<0.000000e+00> : vector<128xf32>
      %23 = vector.multi_reduction <add>, %10, %cst_12 [0] : vector<8x128xf32> to vector<128xf32>
      %24 = vector.shape_cast %23 : vector<128xf32> to vector<1x128xf32>
      %25 = arith.addf %22, %24 : vector<1x128xf32>
      %c0_13 = arith.constant 0 : index
      %c0_14 = arith.constant 0 : index
      %26 = vector.load %arg9[%c0_13, %c0_14] : memref<1x128xf32, #tpu.memory_space<vmem>>, vector<1x128xf32>
      tpu.vector_store %arg9[%c0_13, %c0_14], %25 {strides = array<i32>} : memref<1x128xf32, #tpu.memory_space<vmem>>, vector<1x128xf32>,
      %c0_15 = arith.constant 0 : index
      %c0_16 = arith.constant 0 : index
      %27 = vector.load %arg10[%c0_15, %c0_16] : memref<1x128xf32, #tpu.memory_space<vmem>>, vector<1x128xf32>
      %28 = arith.mulf %10, %10 : vector<8x128xf32>
      %cst_17 = arith.constant dense<0.000000e+00> : vector<128xf32>
      %29 = vector.multi_reduction <add>, %28, %cst_17 [0] : vector<8x128xf32> to vector<128xf32>
      %30 = vector.shape_cast %29 : vector<128xf32> to vector<1x128xf32>
      %31 = arith.addf %27, %30 : vector<1x128xf32>
      %c0_18 = arith.constant 0 : index
      %c0_19 = arith.constant 0 : index
      %32 = vector.load %arg10[%c0_18, %c0_19] : memref<1x128xf32, #tpu.memory_space<vmem>>, vector<1x128xf32>
      tpu.vector_store %arg10[%c0_18, %c0_19], %31 {strides = array<i32>} : memref<1x128xf32, #tpu.memory_space<vmem>>, vector<1x128xf32>,
    } else {
    }
    %c1_i32 = arith.constant 1 : i32
    %19 = arith.cmpi eq, %arg0, %c1_i32 : i32
    %20 = arith.extui %19 : i1 to i32
    %c0_i32_9 = arith.constant 0 : i32
    %21 = arith.cmpi ne, %20, %c0_i32_9 : i32
    scf.if %21 {
      %c0_10 = arith.constant 0 : index
      %c0_11 = arith.constant 0 : index
      %22 = vector.load %arg9[%c0_10, %c0_11] : memref<1x128xf32, #tpu.memory_space<vmem>>, vector<1x128xf32>
      %cst_12 = arith.constant 1.250000e-01 : f32
      %23 = vector.broadcast %cst_12 : f32 to vector<1x128xf32>
      %24 = arith.mulf %22, %23 : vector<1x128xf32>
      %c0_13 = arith.constant 0 : index
      %c0_14 = arith.constant 0 : index
      %25 = vector.load %arg10[%c0_13, %c0_14] : memref<1x128xf32, #tpu.memory_space<vmem>>, vector<1x128xf32>
      %cst_15 = arith.constant 1.250000e-01 : f32
      %26 = vector.broadcast %cst_15 : f32 to vector<1x128xf32>
      %27 = arith.mulf %25, %26 : vector<1x128xf32>
      %28 = arith.mulf %24, %24 : vector<1x128xf32>
      %29 = arith.subf %27, %28 : vector<1x128xf32>
      %c0_16 = arith.constant 0 : index
      %c0_17 = arith.constant 0 : index
      %30 = vector.load %arg5[%c0_16, %c0_17] : memref<1x128xf32, #tpu.memory_space<vmem>>, vector<1x128xf32>
      %cst_18 = arith.constant 9.99999974E-6 : f32
      %31 = vector.broadcast %cst_18 : f32 to vector<1x128xf32>
      %32 = arith.addf %29, %31 : vector<1x128xf32>
      %33 = math.rsqrt %32 : vector<1x128xf32>
      %34 = arith.mulf %30, %33 : vector<1x128xf32>
      %c0_19 = arith.constant 0 : index
      %c0_20 = arith.constant 0 : index
      %35 = vector.load %arg6[%c0_19, %c0_20] : memref<1x128xf32, #tpu.memory_space<vmem>>, vector<1x128xf32>
      %36 = arith.mulf %24, %34 : vector<1x128xf32>
      %37 = arith.subf %35, %36 : vector<1x128xf32>
      %38 = vector.broadcast %34 : vector<1x128xf32> to vector<8x128xf32>
      %39 = arith.mulf %10, %38 : vector<8x128xf32>
      %40 = vector.broadcast %37 : vector<1x128xf32> to vector<8x128xf32>
      %41 = arith.addf %39, %40 : vector<8x128xf32>
      %c0_21 = arith.constant 0 : index
      %c0_22 = arith.constant 0 : index
      %42 = vector.load %arg7[%c0_21, %c0_22] : memref<128x128xf32, #tpu.memory_space<vmem>>, vector<128x128xf32>
      %cst_23 = arith.constant dense<0.000000e+00> : vector<8x128xf32>
      %43 = tpu.matmul %41, %42, %cst_23 {dimension_numbers = #tpu.dot_dimension_numbers<[1], [0], [0], [1], [0, 0, 1, 1], [], []>} : vector<8x128xf32>, vector<128x128xf32>, vector<8x128xf32> -> vector<8x128xf32>
      %c0_24 = arith.constant 0 : index
      %c0_25 = arith.constant 0 : index
      %44 = vector.load %arg8[%c0_24, %c0_25] : memref<1x128xf32, #tpu.memory_space<vmem>>, vector<1x128xf32>
      %45 = vector.broadcast %44 : vector<1x128xf32> to vector<8x128xf32>
      %46 = arith.addf %43, %45 : vector<8x128xf32>
      %cst_26 = arith.constant 0.000000e+00 : f32
      %47 = vector.broadcast %cst_26 : f32 to vector<8x128xf32>
      %48 = arith.maximumf %46, %47 : vector<8x128xf32>
      %c0_i32_27 = arith.constant 0 : i32
      %49 = arith.cmpi eq, %arg1, %c0_i32_27 : i32
      %50 = arith.extui %49 : i1 to i32
      %c0_i32_28 = arith.constant 0 : i32
      %51 = arith.cmpi ne, %50, %c0_i32_28 : i32
      scf.if %51 {
        %cst_39 = arith.constant 0.000000e+00 : f32
        %63 = vector.broadcast %cst_39 : f32 to vector<1x128xf32>
        %c0_40 = arith.constant 0 : index
        %c0_41 = arith.constant 0 : index
        %64 = vector.load %arg11[%c0_40, %c0_41] : memref<1x128xf32, #tpu.memory_space<vmem>>, vector<1x128xf32>
        tpu.vector_store %arg11[%c0_40, %c0_41], %63 {strides = array<i32>} : memref<1x128xf32, #tpu.memory_space<vmem>>, vector<1x128xf32>,
        %cst_42 = arith.constant 0.000000e+00 : f32
        %65 = vector.broadcast %cst_42 : f32 to vector<1x128xf32>
        %c0_43 = arith.constant 0 : index
        %c0_44 = arith.constant 0 : index
        %66 = vector.load %arg12[%c0_43, %c0_44] : memref<1x128xf32, #tpu.memory_space<vmem>>, vector<1x128xf32>
        tpu.vector_store %arg12[%c0_43, %c0_44], %65 {strides = array<i32>} : memref<1x128xf32, #tpu.memory_space<vmem>>, vector<1x128xf32>,
      } else {
      }
      %c0_29 = arith.constant 0 : index
      %c0_30 = arith.constant 0 : index
      %52 = vector.load %arg11[%c0_29, %c0_30] : memref<1x128xf32, #tpu.memory_space<vmem>>, vector<1x128xf32>
      %cst_31 = arith.constant dense<0.000000e+00> : vector<128xf32>
      %53 = vector.multi_reduction <add>, %48, %cst_31 [0] : vector<8x128xf32> to vector<128xf32>
      %54 = vector.shape_cast %53 : vector<128xf32> to vector<1x128xf32>
      %55 = arith.addf %52, %54 : vector<1x128xf32>
      %c0_32 = arith.constant 0 : index
      %c0_33 = arith.constant 0 : index
      %56 = vector.load %arg11[%c0_32, %c0_33] : memref<1x128xf32, #tpu.memory_space<vmem>>, vector<1x128xf32>
      tpu.vector_store %arg11[%c0_32, %c0_33], %55 {strides = array<i32>} : memref<1x128xf32, #tpu.memory_space<vmem>>, vector<1x128xf32>,
      %c0_34 = arith.constant 0 : index
      %c0_35 = arith.constant 0 : index
      %57 = vector.load %arg12[%c0_34, %c0_35] : memref<1x128xf32, #tpu.memory_space<vmem>>, vector<1x128xf32>
      %58 = arith.mulf %48, %48 : vector<8x128xf32>
      %cst_36 = arith.constant dense<0.000000e+00> : vector<128xf32>
      %59 = vector.multi_reduction <add>, %58, %cst_36 [0] : vector<8x128xf32> to vector<128xf32>
      %60 = vector.shape_cast %59 : vector<128xf32> to vector<1x128xf32>
      %61 = arith.addf %57, %60 : vector<1x128xf32>
      %c0_37 = arith.constant 0 : index
      %c0_38 = arith.constant 0 : index
      %62 = vector.load %arg12[%c0_37, %c0_38] : memref<1x128xf32, #tpu.memory_space<vmem>>, vector<1x128xf32>
      tpu.vector_store %arg12[%c0_37, %c0_38], %61 {strides = array<i32>} : memref<1x128xf32, #tpu.memory_space<vmem>>, vector<1x128xf32>,
    } else {
    }
    return
  }
  func.func @transform_0(%arg0: i32, %arg1: i32) -> (i32, i32) {
    %c0_i32 = arith.constant 0 : i32
    %c0_i32_0 = arith.constant 0 : i32
    %c0_i32_1 = arith.constant 0 : i32
    return %c0_i32, %c0_i32_0 : i32, i32
  }
  func.func @transform_1(%arg0: i32, %arg1: i32) -> (i32, i32) {
    %c0_i32 = arith.constant 0 : i32
    %c0_i32_0 = arith.constant 0 : i32
    %c0_i32_1 = arith.constant 0 : i32
    return %c0_i32, %c0_i32_0 : i32, i32
  }
  func.func @transform_2(%arg0: i32, %arg1: i32) -> (i32, i32) {
    %c0_i32 = arith.constant 0 : i32
    %c0_i32_0 = arith.constant 0 : i32
    %c0_i32_1 = arith.constant 0 : i32
    return %c0_i32, %c0_i32_0 : i32, i32
  }
  func.func @transform_3(%arg0: i32, %arg1: i32) -> (i32, i32) {
    %c0_i32 = arith.constant 0 : i32
    %c0_i32_0 = arith.constant 0 : i32
    %c0_i32_1 = arith.constant 0 : i32
    return %c0_i32, %c0_i32_0 : i32, i32
  }
  func.func @transform_4(%arg0: i32, %arg1: i32) -> (i32, i32) {
    %c0_i32 = arith.constant 0 : i32
    %c0_i32_0 = arith.constant 0 : i32
    %c0_i32_1 = arith.constant 0 : i32
    return %c0_i32, %c0_i32_0 : i32, i32
  }
  func.func @transform_5(%arg0: i32, %arg1: i32) -> (i32, i32) {
    %c0_i32 = arith.constant 0 : i32
    %c0_i32_0 = arith.constant 0 : i32
    %c0_i32_1 = arith.constant 0 : i32
    return %c0_i32, %c0_i32_0 : i32, i32
  }
  func.func @transform_6(%arg0: i32, %arg1: i32) -> (i32, i32) {
    %c0_i32 = arith.constant 0 : i32
    %c0_i32_0 = arith.constant 0 : i32
    %c0_i32_1 = arith.constant 0 : i32
    return %c0_i32, %c0_i32_0 : i32, i32
  }
  func.func @transform_7(%arg0: i32, %arg1: i32) -> (i32, i32) {
    %c0_i32 = arith.constant 0 : i32
    %c0_i32_0 = arith.constant 0 : i32
    %c0_i32_1 = arith.constant 0 : i32
    return %c0_i32, %c0_i32_0 : i32, i32
  }
  func.func @transform_8(%arg0: i32, %arg1: i32) -> (i32, i32) {
    %c0_i32 = arith.constant 0 : i32
    %c0_i32_0 = arith.constant 0 : i32
    %c0_i32_1 = arith.constant 0 : i32
    return %c0_i32, %c0_i32_0 : i32, i32
  }
  func.func @transform_9(%arg0: i32, %arg1: i32) -> (i32, i32) {
    %c0_i32 = arith.constant 0 : i32
    %c0_i32_0 = arith.constant 0 : i32
    %c0_i32_1 = arith.constant 0 : i32
    return %c0_i32, %c0_i32_0 : i32, i32
  }
  func.func @transform_10(%arg0: i32, %arg1: i32) -> (i32, i32) {
    %c0_i32 = arith.constant 0 : i32
    %c0_i32_0 = arith.constant 0 : i32
    %c0_i32_1 = arith.constant 0 : i32
    return %c0_i32, %c0_i32_0 : i32, i32
  }
}

</mosaic_0001>

<llo_original>
// kernel: tpu_custom_call.1
$region0: #{tpu_custom_call.1}
  #allocation0 [shape = 'u32[]', space=smem, size = 0x4, offset = 0x4, fixed_abs, tag = 'smem constant byte address 0x4 - core index']
  #allocation1 [shape = 'u32[144,128]{1,0:T(1,128)}', space=vmem, size = 0x12000, scoped, tag = 'internal scratch']
  %s0 = inlined_call_operand.hbm [shape: f32[8,128], index: 0, kind: input, shape index: {}]
  %s1 = inlined_call_operand.hbm [shape: f32[128,128], index: 1, kind: input, shape index: {}]
  %s2 = inlined_call_operand.vmem [shape: f32[1,128], index: 2, kind: input, shape index: {}]
  %s3 = inlined_call_operand.vmem [shape: f32[1,128], index: 3, kind: input, shape index: {}]
  %s4 = inlined_call_operand.vmem [shape: f32[1,128], index: 4, kind: input, shape index: {}]
  %s5 = inlined_call_operand.hbm [shape: f32[128,128], index: 5, kind: input, shape index: {}]
  %s6 = inlined_call_operand.vmem [shape: f32[1,128], index: 6, kind: input, shape index: {}]
  %s7 = inlined_call_operand.hbm [shape: f32[1,128], index: 7, kind: output, shape index: {0}]
  %s8 = inlined_call_operand.hbm [shape: f32[1,128], index: 8, kind: output, shape index: {1}]
  %s9 = inlined_call_operand.hbm [shape: f32[1,128], index: 9, kind: output, shape index: {2}]
  %s10 = inlined_call_operand.hbm [shape: f32[1,128], index: 10, kind: output, shape index: {3}]
  %11 = xla_tuple %s7, %s8, %s9, %s10
  %s12 = sld [smem:[#allocation0]]
  $region113: #{tpu_custom_call.1} parent=0
    _
  %s14 = ssub.s32 1, %s12
  %s15 = scalar_select 0, %s14, %s12
  $region1: #{tpu_custom_call.1} parent=0
    #allocation2 [shape = 'u8[4096]{0}', space=vmem, size = 0x1000, scoped, tag = 'input window, operand 0, single buffered']
    #allocation3 [shape = 's32[2]{0}', space=sflag, size = 0x8, scoped, tag = 'scoped memory for tpu_custom_call.1']
    #allocation4 [shape = 's32[2]{0}', space=sflag, size = 0x8, scoped, tag = 'scoped memory for tpu_custom_call.1']
    #allocation5 [shape = 'u8[65536]{0}', space=vmem, size = 0x10000, scoped, tag = 'input window, operand 1, single buffered']
    #allocation6 [shape = 's32[1]{0}', space=sflag, size = 0x4, scoped, tag = 'scoped memory for tpu_custom_call.1']
    #allocation7 [shape = 'u8[65536]{0}', space=vmem, size = 0x10000, scoped, tag = 'input window, operand 5, single buffered']
    #allocation8 [shape = 'u8[512]{0}', space=vmem, size = 0x400, scoped, tag = 'output window, operand 0, single buffered']
    #allocation9 [shape = 'u8[512]{0}', space=vmem, size = 0x400, scoped, tag = 'output window, operand 1, single buffered']
    #allocation10 [shape = 's32[1]{0}', space=sflag, size = 0x4, scoped, tag = 'scoped memory for tpu_custom_call.1']
    #allocation11 [shape = 'u8[512]{0}', space=vmem, size = 0x400, scoped, tag = 'output window, operand 2, single buffered']
    #allocation12 [shape = 'u8[512]{0}', space=vmem, size = 0x400, scoped, tag = 'output window, operand 3, single buffered']
    #allocation13 [shape = 's32[1]{0}', space=sflag, size = 0x4, scoped, tag = 'scoped memory for tpu_custom_call.1']
    %16 = vsyncpa [#allocation3], 0
    %17 = vsyncpa [#allocation6], 0
    %18 = vsyncpa [#allocation4], 0
    %19 = vsyncpa [#allocation10], 0
    %20 = vsyncpa [#allocation13], 0
    loop: start=0, step=1, limit=4
    $region2: #{tpu_custom_call.1} parent=1 // loop_pre_header
      _
    $region3: #{tpu_custom_call.1} parent=1 // loop_header
      %s22 = sphi 0, %s26
      %p23 = scmp.ge.s32.totalorder %s22, 4
      %s29 = sphi 0, %s41
      %s30 = sphi 0, %s37
      %s31 = sphi 0, %s29
      %s32 = sphi 0, %s30
      %s33 = sphi 0, %s31
      %s34 = sphi 0, %s32
      %s42 = sphi 0, %s42
      %s44 = sphi 0, %s42
      %s45 = sphi 0, %s44
      %s59 = sphi 0, %s45
      %s63 = sphi 0, %s63
      %s65 = sphi 0, %s63
      %s66 = sphi 0, %s65
      %s80 = sphi 0, %s66
      %s84 = sphi 0, %s84
      %s86 = sphi 0, %s84
      %s87 = sphi 0, %s86
      %s101 = sphi 0, %s87
      %s105 = sphi 0, %s105
      %s107 = sphi 0, %s105
      %s108 = sphi 0, %s107
      %s122 = sphi 0, %s108
      %s126 = sphi 0, %s126
      %s128 = sphi 0, %s126
      %s129 = sphi 0, %s128
      %s143 = sphi 0, %s129
      %s147 = sphi 0, %s147
      %s149 = sphi 0, %s147
      %s150 = sphi 0, %s149
      %s164 = sphi 0, %s150
      %s168 = sphi 0, %s168
      %s170 = sphi 0, %s168
      %s171 = sphi 0, %s170
      %s185 = sphi 0, %s171
      %s189 = sphi 0, %s189
      %s191 = sphi 0, %s189
      %s192 = sphi 0, %s191
      %s206 = sphi 0, %s192
      %s210 = sphi 0, %s210
      %s212 = sphi 0, %s210
      %s213 = sphi 0, %s212
      %s227 = sphi 0, %s213
      %s231 = sphi 0, %s231
      %s233 = sphi 0, %s231
      %s234 = sphi 0, %s233
      %s248 = sphi 0, %s234
      %s252 = sphi 0, %s252
      %s254 = sphi 0, %s252
      %s255 = sphi 0, %s254
      %s269 = sphi 0, %s255
    $region4: #{tpu_custom_call.1} parent=1 // loop_header_branch
      %25 = sbr.rel (%p23) target = $region8
    $region5: #{tpu_custom_call.1} parent=1 // loop_body
      %s27 = ssub.s32 %s22, 1
      %s28 = ssub.s32 %s22, 2
      %s35 = sadd.s32 1, %s30
      %p36 = scmp.ge.s32.totalorder %s35, 1
      %s37 = scalar_select %p36, 0, %s35
      %s38 = sadd.s32 1, %s29
      %s39 = scalar_select %p36, %s38, %s29
      %p40 = scmp.ge.s32.totalorder %s39, 2
      %s41 = scalar_select %p40, 0, %s39
      %s43 = sadd.s32 %s42, 1
      %p46 = scmp.eq.s32.totalorder %s22, 1
      %p47 = scmp.ne.s32.totalorder %s42, %s44
      %p48 = scmp.eq.s32.totalorder %s22, 0
      %p49 = por %p47, %p48
      %p50 = scmp.ne.s32.totalorder %s42, %s44
      %p51 = scmp.eq.s32.totalorder %s27, 1
      %p52 = por %p50, %p51
      %p53 = scmp.ne.s32.totalorder %s44, %s45
      %p54 = scmp.eq.s32.totalorder %s27, 0
      %p55 = por %p53, %p54
      %p56 = scmp.ne.s32.totalorder %s44, %s45
      %p57 = scmp.eq.s32.totalorder %s28, 1
      %p58 = por %p56, %p57
      %p60 = scmp.ne.s32.totalorder %s45, %s59
      %p61 = scmp.eq.s32.totalorder %s28, 0
      %p62 = por %p60, %p61
      %s64 = sadd.s32 %s63, 1
      %p67 = scmp.eq.s32.totalorder %s22, 1
      %p68 = scmp.ne.s32.totalorder %s63, %s65
      %p69 = scmp.eq.s32.totalorder %s22, 0
      %p70 = por %p68, %p69
      %p71 = scmp.ne.s32.totalorder %s63, %s65
      %p72 = scmp.eq.s32.totalorder %s27, 1
      %p73 = por %p71, %p72
      %p74 = scmp.ne.s32.totalorder %s65, %s66
      %p75 = scmp.eq.s32.totalorder %s27, 0
      %p76 = por %p74, %p75
      %p77 = scmp.ne.s32.totalorder %s65, %s66
      %p78 = scmp.eq.s32.totalorder %s28, 1
      %p79 = por %p77, %p78
      %p81 = scmp.ne.s32.totalorder %s66, %s80
      %p82 = scmp.eq.s32.totalorder %s28, 0
      %p83 = por %p81, %p82
      %s85 = sadd.s32 %s84, 1
      %p88 = scmp.eq.s32.totalorder %s22, 1
      %p89 = scmp.ne.s32.totalorder %s84, %s86
      %p90 = scmp.eq.s32.totalorder %s22, 0
      %p91 = por %p89, %p90
      %p92 = scmp.ne.s32.totalorder %s84, %s86
      %p93 = scmp.eq.s32.totalorder %s27, 1
      %p94 = por %p92, %p93
      %p95 = scmp.ne.s32.totalorder %s86, %s87
      %p96 = scmp.eq.s32.totalorder %s27, 0
      %p97 = por %p95, %p96
      %p98 = scmp.ne.s32.totalorder %s86, %s87
      %p99 = scmp.eq.s32.totalorder %s28, 1
      %p100 = por %p98, %p99
      %p102 = scmp.ne.s32.totalorder %s87, %s101
      %p103 = scmp.eq.s32.totalorder %s28, 0
      %p104 = por %p102, %p103
      %s106 = sadd.s32 %s105, 1
      %p109 = scmp.eq.s32.totalorder %s22, 1
      %p110 = scmp.ne.s32.totalorder %s105, %s107
      %p111 = scmp.eq.s32.totalorder %s22, 0
      %p112 = por %p110, %p111
      %p113 = scmp.ne.s32.totalorder %s105, %s107
      %p114 = scmp.eq.s32.totalorder %s27, 1
      %p115 = por %p113, %p114
      %p116 = scmp.ne.s32.totalorder %s107, %s108
      %p117 = scmp.eq.s32.totalorder %s27, 0
      %p118 = por %p116, %p117
      %p119 = scmp.ne.s32.totalorder %s107, %s108
      %p120 = scmp.eq.s32.totalorder %s28, 1
      %p121 = por %p119, %p120
      %p123 = scmp.ne.s32.totalorder %s108, %s122
      %p124 = scmp.eq.s32.totalorder %s28, 0
      %p125 = por %p123, %p124
      %s127 = sadd.s32 %s126, 1
      %p130 = scmp.eq.s32.totalorder %s22, 1
      %p131 = scmp.ne.s32.totalorder %s126, %s128
      %p132 = scmp.eq.s32.totalorder %s22, 0
      %p133 = por %p131, %p132
      %p134 = scmp.ne.s32.totalorder %s126, %s128
      %p135 = scmp.eq.s32.totalorder %s27, 1
      %p136 = por %p134, %p135
      %p137 = scmp.ne.s32.totalorder %s128, %s129
      %p138 = scmp.eq.s32.totalorder %s27, 0
      %p139 = por %p137, %p138
      %p140 = scmp.ne.s32.totalorder %s128, %s129
      %p141 = scmp.eq.s32.totalorder %s28, 1
      %p142 = por %p140, %p141
      %p144 = scmp.ne.s32.totalorder %s129, %s143
      %p145 = scmp.eq.s32.totalorder %s28, 0
      %p146 = por %p144, %p145
      %s148 = sadd.s32 %s147, 1
      %p151 = scmp.eq.s32.totalorder %s22, 1
      %p152 = scmp.ne.s32.totalorder %s147, %s149
      %p153 = scmp.eq.s32.totalorder %s22, 0
      %p154 = por %p152, %p153
      %p155 = scmp.ne.s32.totalorder %s147, %s149
      %p156 = scmp.eq.s32.totalorder %s27, 1
      %p157 = por %p155, %p156
      %p158 = scmp.ne.s32.totalorder %s149, %s150
      %p159 = scmp.eq.s32.totalorder %s27, 0
      %p160 = por %p158, %p159
      %p161 = scmp.ne.s32.totalorder %s149, %s150
      %p162 = scmp.eq.s32.totalorder %s28, 1
      %p163 = por %p161, %p162
      %p165 = scmp.ne.s32.totalorder %s150, %s164
      %p166 = scmp.eq.s32.totalorder %s28, 0
      %p167 = por %p165, %p166
      %s169 = sadd.s32 %s168, 1
      %p172 = scmp.eq.s32.totalorder %s22, 1
      %p173 = scmp.ne.s32.totalorder %s168, %s170
      %p174 = scmp.eq.s32.totalorder %s22, 0
      %p175 = por %p173, %p174
      %p176 = scmp.ne.s32.totalorder %s168, %s170
      %p177 = scmp.eq.s32.totalorder %s27, 1
      %p178 = por %p176, %p177
      %p179 = scmp.ne.s32.totalorder %s170, %s171
      %p180 = scmp.eq.s32.totalorder %s27, 0
      %p181 = por %p179, %p180
      %p182 = scmp.ne.s32.totalorder %s170, %s171
      %p183 = scmp.eq.s32.totalorder %s28, 1
      %p184 = por %p182, %p183
      %p186 = scmp.ne.s32.totalorder %s171, %s185
      %p187 = scmp.eq.s32.totalorder %s28, 0
      %p188 = por %p186, %p187
      %s190 = sadd.s32 %s189, 1
      %p193 = scmp.eq.s32.totalorder %s22, 1
      %p194 = scmp.ne.s32.totalorder %s189, %s191
      %p195 = scmp.eq.s32.totalorder %s22, 0
      %p196 = por %p194, %p195
      %p197 = scmp.ne.s32.totalorder %s189, %s191
      %p198 = scmp.eq.s32.totalorder %s27, 1
      %p199 = por %p197, %p198
      %p200 = scmp.ne.s32.totalorder %s191, %s192
      %p201 = scmp.eq.s32.totalorder %s27, 0
      %p202 = por %p200, %p201
      %p203 = scmp.ne.s32.totalorder %s191, %s192
      %p204 = scmp.eq.s32.totalorder %s28, 1
      %p205 = por %p203, %p204
      %p207 = scmp.ne.s32.totalorder %s192, %s206
      %p208 = scmp.eq.s32.totalorder %s28, 0
      %p209 = por %p207, %p208
      %s211 = sadd.s32 %s210, 1
      %p214 = scmp.eq.s32.totalorder %s22, 1
      %p215 = scmp.ne.s32.totalorder %s210, %s212
      %p216 = scmp.eq.s32.totalorder %s22, 0
      %p217 = por %p215, %p216
      %p218 = scmp.ne.s32.totalorder %s210, %s212
      %p219 = scmp.eq.s32.totalorder %s27, 1
      %p220 = por %p218, %p219
      %p221 = scmp.ne.s32.totalorder %s212, %s213
      %p222 = scmp.eq.s32.totalorder %s27, 0
      %p223 = por %p221, %p222
      %p224 = scmp.ne.s32.totalorder %s212, %s213
      %p225 = scmp.eq.s32.totalorder %s28, 1
      %p226 = por %p224, %p225
      %p228 = scmp.ne.s32.totalorder %s213, %s227
      %p229 = scmp.eq.s32.totalorder %s28, 0
      %p230 = por %p228, %p229
      %s232 = sadd.s32 %s231, 1
      %p235 = scmp.eq.s32.totalorder %s22, 1
      %p236 = scmp.ne.s32.totalorder %s231, %s233
      %p237 = scmp.eq.s32.totalorder %s22, 0
      %p238 = por %p236, %p237
      %p239 = scmp.ne.s32.totalorder %s231, %s233
      %p240 = scmp.eq.s32.totalorder %s27, 1
      %p241 = por %p239, %p240
      %p242 = scmp.ne.s32.totalorder %s233, %s234
      %p243 = scmp.eq.s32.totalorder %s27, 0
      %p244 = por %p242, %p243
      %p245 = scmp.ne.s32.totalorder %s233, %s234
      %p246 = scmp.eq.s32.totalorder %s28, 1
      %p247 = por %p245, %p246
      %p249 = scmp.ne.s32.totalorder %s234, %s248
      %p250 = scmp.eq.s32.totalorder %s28, 0
      %p251 = por %p249, %p250
      %s253 = sadd.s32 %s252, 1
      %p256 = scmp.eq.s32.totalorder %s22, 1
      %p257 = scmp.ne.s32.totalorder %s252, %s254
      %p258 = scmp.eq.s32.totalorder %s22, 0
      %p259 = por %p257, %p258
      %p260 = scmp.ne.s32.totalorder %s252, %s254
      %p261 = scmp.eq.s32.totalorder %s27, 1
      %p262 = por %p260, %p261
      %p263 = scmp.ne.s32.totalorder %s254, %s255
      %p264 = scmp.eq.s32.totalorder %s27, 0
      %p265 = por %p263, %p264
      %p266 = scmp.ne.s32.totalorder %s254, %s255
      %p267 = scmp.eq.s32.totalorder %s28, 1
      %p268 = por %p266, %p267
      %p270 = scmp.ne.s32.totalorder %s255, %s269
      %p271 = scmp.eq.s32.totalorder %s28, 0
      %p272 = por %p270, %p271
      %p273 = scmp.le.s32.totalorder 1, %s22
      %p274 = scmp.lt.s32.totalorder %s22, 3
      %p275 = pnand %p273, %p274
      %p276 = pneg %p275
      // Predicated region
      $region9: #{tpu_custom_call.1} parent=5 // pred_check
        _
      $region10: #{tpu_custom_call.1} parent=5 // pred_check_branch
        %278 = sbr.rel (%p275) target = $region12
      $region11: #{tpu_custom_call.1} parent=5 // pred_region
        %s279 = ssub.s32 %s22, 1
        // Predicated region
        $region13: #{tpu_custom_call.1} parent=11 // pred_check
          %p280 = pneg %p55
        $region14: #{tpu_custom_call.1} parent=11 // pred_check_branch
          %282 = sbr.rel (%p280) target = $region16
        $region15: #{tpu_custom_call.1} parent=11 // pred_region
          %s284 = ssub.s32 128, 128
          %285 = vsyncadd [#allocation3], %s284
          %s287 = sshll.u32 [#allocation2], 4
          %s288 = int_to_ptr.vmem [resolvable:$true] %s287
          %290 = dma.hbm_to_vmem [thread:$0]  %s0, 128, %s288, [#allocation3]
        $region16: #{tpu_custom_call.1} parent=11 // pred_fallthru
          _
        // Predicated region
        $region17: #{tpu_custom_call.1} parent=11 // pred_check
          %p291 = pneg %p76
        $region18: #{tpu_custom_call.1} parent=11 // pred_check_branch
          %293 = sbr.rel (%p291) target = $region20
        $region19: #{tpu_custom_call.1} parent=11 // pred_region
          %s295 = ssub.s32 2048, 2048
          %296 = vsyncadd [#allocation6], %s295
          %s297 = sshll.u32 [#allocation5], 4
          %s298 = int_to_ptr.vmem [resolvable:$true] %s297
          %303 = dma.hbm_to_vmem [thread:$0]  %s1, 2048, %s298, [#allocation6], 128, 128, 8
        $region20: #{tpu_custom_call.1} parent=11 // pred_fallthru
          _
        // Predicated region
        $region21: #{tpu_custom_call.1} parent=11 // pred_check
          %p304 = pneg %p97
        $region22: #{tpu_custom_call.1} parent=11 // pred_check_branch
          %306 = sbr.rel (%p304) target = $region24
        $region23: #{tpu_custom_call.1} parent=11 // pred_region
          _
        $region24: #{tpu_custom_call.1} parent=11 // pred_fallthru
          _
        // Predicated region
        $region25: #{tpu_custom_call.1} parent=11 // pred_check
          %p307 = pneg %p118
        $region26: #{tpu_custom_call.1} parent=11 // pred_check_branch
          %309 = sbr.rel (%p307) target = $region28
        $region27: #{tpu_custom_call.1} parent=11 // pred_region
          _
        $region28: #{tpu_custom_call.1} parent=11 // pred_fallthru
          _
        // Predicated region
        $region29: #{tpu_custom_call.1} parent=11 // pred_check
          %p310 = pneg %p139
        $region30: #{tpu_custom_call.1} parent=11 // pred_check_branch
          %312 = sbr.rel (%p310) target = $region32
        $region31: #{tpu_custom_call.1} parent=11 // pred_region
          _
        $region32: #{tpu_custom_call.1} parent=11 // pred_fallthru
          _
        // Predicated region
        $region33: #{tpu_custom_call.1} parent=11 // pred_check
          %p313 = pneg %p160
        $region34: #{tpu_custom_call.1} parent=11 // pred_check_branch
          %315 = sbr.rel (%p313) target = $region36
        $region35: #{tpu_custom_call.1} parent=11 // pred_region
          %s317 = ssub.s32 2048, 2048
          %318 = vsyncadd [#allocation6], %s317
          %s319 = sshll.u32 [#allocation7], 4
          %s320 = int_to_ptr.vmem [resolvable:$true] %s319
          %325 = dma.hbm_to_vmem [thread:$0]  %s5, 2048, %s320, [#allocation6], 128, 128, 8
        $region36: #{tpu_custom_call.1} parent=11 // pred_fallthru
          _
        // Predicated region
        $region37: #{tpu_custom_call.1} parent=11 // pred_check
          %p326 = pneg %p181
        $region38: #{tpu_custom_call.1} parent=11 // pred_check_branch
          %328 = sbr.rel (%p326) target = $region40
        $region39: #{tpu_custom_call.1} parent=11 // pred_region
          _
        $region40: #{tpu_custom_call.1} parent=11 // pred_fallthru
          _
      $region12: #{tpu_custom_call.1} parent=5 // pred_fallthru
        _
      %p329 = scmp.lt.s32.totalorder %s22, 2
      // Predicated region
      $region41: #{tpu_custom_call.1} parent=5 // pred_check
        %p330 = pneg %p329
      $region42: #{tpu_custom_call.1} parent=5 // pred_check_branch
        %332 = sbr.rel (%p330) target = $region44
      $region43: #{tpu_custom_call.1} parent=5 // pred_region
        _
      $region44: #{tpu_custom_call.1} parent=5 // pred_fallthru
        _
      %p333 = scmp.le.s32.totalorder 1, %s22
      %p334 = scmp.lt.s32.totalorder %s22, 3
      %p335 = pnand %p333, %p334
      %p336 = pneg %p335
      // Predicated region
      $region45: #{tpu_custom_call.1} parent=5 // pred_check
        _
      $region46: #{tpu_custom_call.1} parent=5 // pred_check_branch
        %338 = sbr.rel (%p335) target = $region48
      $region47: #{tpu_custom_call.1} parent=5 // pred_region
        %s339 = ssub.s32 %s22, 1
        // Predicated region
        $region49: #{tpu_custom_call.1} parent=47 // pred_check
          %p340 = pneg %p55
        $region50: #{tpu_custom_call.1} parent=47 // pred_check_branch
          %342 = sbr.rel (%p340) target = $region52
        $region51: #{tpu_custom_call.1} parent=47 // pred_region
          %343 = dma.done [#allocation3], 128
        $region52: #{tpu_custom_call.1} parent=47 // pred_fallthru
          _
        // Predicated region
        $region53: #{tpu_custom_call.1} parent=47 // pred_check
          %p344 = pneg %p76
        $region54: #{tpu_custom_call.1} parent=47 // pred_check_branch
          %346 = sbr.rel (%p344) target = $region56
        $region55: #{tpu_custom_call.1} parent=47 // pred_region
          %347 = dma.done [#allocation6], 2048
        $region56: #{tpu_custom_call.1} parent=47 // pred_fallthru
          _
        // Predicated region
        $region57: #{tpu_custom_call.1} parent=47 // pred_check
          %p348 = pneg %p160
        $region58: #{tpu_custom_call.1} parent=47 // pred_check_branch
          %350 = sbr.rel (%p348) target = $region60
        $region59: #{tpu_custom_call.1} parent=47 // pred_region
          %351 = dma.done [#allocation6], 2048
        $region60: #{tpu_custom_call.1} parent=47 // pred_fallthru
          _
        %p352 = pneg %p55
        %p353 = pneg %p52
        %p354 = pneg %p76
        %p355 = pneg %p73
        %p356 = pneg %p97
        %p357 = pneg %p94
        %p358 = pneg %p118
        %p359 = pneg %p115
        %p360 = pneg %p139
        %p361 = pneg %p136
        %p362 = pneg %p160
        %p363 = pneg %p157
        %p364 = pneg %p181
        %p365 = pneg %p178
        %p366 = pneg %p202
        %p367 = pneg %p199
        %p368 = pneg %p223
        %p369 = pneg %p220
        %p370 = pneg %p244
        %p371 = pneg %p241
        %p372 = pneg %p265
        %p373 = pneg %p262
        %s374 = smul.u32 %s32, 8
        %s375 = scalar_lea.vmem [#allocation2], %s374
        %v376 = vld [vmem:[%s375] sm:$0xff]
        %v377 = vld [vmem:[#allocation5] sm:$0xff]
        %v378 = vld [vmem:[#allocation5 + $0x8] sm:$0xff]
        %v379 = vld [vmem:[#allocation5 + $0x10] sm:$0xff]
        %v380 = vld [vmem:[#allocation5 + $0x18] sm:$0xff]
        %v381 = vld [vmem:[#allocation5 + $0x20] sm:$0xff]
        %v382 = vld [vmem:[#allocation5 + $0x28] sm:$0xff]
        %v383 = vld [vmem:[#allocation5 + $0x30] sm:$0xff]
        %v384 = vld [vmem:[#allocation5 + $0x38] sm:$0xff]
        %v385 = vld [vmem:[#allocation5 + $0x40] sm:$0xff]
        %v386 = vld [vmem:[#allocation5 + $0x48] sm:$0xff]
        %v387 = vld [vmem:[#allocation5 + $0x50] sm:$0xff]
        %v388 = vld [vmem:[#allocation5 + $0x58] sm:$0xff]
        %v389 = vld [vmem:[#allocation5 + $0x60] sm:$0xff]
        %v390 = vld [vmem:[#allocation5 + $0x68] sm:$0xff]
        %v391 = vld [vmem:[#allocation5 + $0x70] sm:$0xff]
        %v392 = vld [vmem:[#allocation5 + $0x78] sm:$0xff]
        %v393 = vld [vmem:[%s2] sm:$0x1]
        %v395 = vlaneseq
        %v396 = vshrl.u32 %v395, 7
        %v397 = vsub.s32 0, %v396
        %v398 = vrot.slane %v393, %v397
        %400 = vmatprep.subr.mxu0 0.0
        %401 = vmatpush1.msra.mxu0 %v377
        %402 = vmatprep.subr.mxu0 0.0
        %403 = vmatpush1.msra.mxu0 %v378
        %404 = vmatprep.subr.mxu0 0.0
        %405 = vmatpush1.msra.mxu0 %v379
        %406 = vmatprep.subr.mxu0 0.0
        %407 = vmatpush1.msra.mxu0 %v380
        %408 = vmatprep.subr.mxu0 0.0
        %409 = vmatpush1.msra.mxu0 %v381
        %410 = vmatprep.subr.mxu0 0.0
        %411 = vmatpush1.msra.mxu0 %v382
        %412 = vmatprep.subr.mxu0 0.0
        %413 = vmatpush1.msra.mxu0 %v383
        %414 = vmatprep.subr.mxu0 0.0
        %415 = vmatpush1.msra.mxu0 %v384
        %416 = vmatprep.subr.mxu0 0.0
        %417 = vmatpush1.msra.mxu0 %v385
        %418 = vmatprep.subr.mxu0 0.0
        %419 = vmatpush1.msra.mxu0 %v386
        %420 = vmatprep.subr.mxu0 0.0
        %421 = vmatpush1.msra.mxu0 %v387
        %422 = vmatprep.subr.mxu0 0.0
        %423 = vmatpush1.msra.mxu0 %v388
        %424 = vmatprep.subr.mxu0 0.0
        %425 = vmatpush1.msra.mxu0 %v389
        %426 = vmatprep.subr.mxu0 0.0
        %427 = vmatpush1.msra.mxu0 %v390
        %428 = vmatprep.subr.mxu0 0.0
        %429 = vmatpush1.msra.mxu0 %v391
        %430 = vmatprep.subr.mxu0 0.0
        %431 = vmatpush1.msra.mxu0 %v392
        %432 = vmatprep.subr.mxu0 0.0
        %433 = vmatpush1.msra.mxu0 0.0
        %434 = vmatprep.subr.mxu0 0.0
        %435 = vmatpush1.msra.mxu0 0.0
        %436 = vmatprep.subr.mxu0 0.0
        %437 = vmatpush1.msra.mxu0 0.0
        %438 = vmatprep.subr.mxu0 0.0
        %439 = vmatpush1.msra.mxu0 0.0
        %440 = vmatprep.subr.mxu0 0.0
        %441 = vmatpush1.msra.mxu0 0.0
        %442 = vmatprep.subr.mxu0 0.0
        %443 = vmatpush1.msra.mxu0 0.0
        %444 = vmatprep.subr.mxu0 0.0
        %445 = vmatpush1.msra.mxu0 0.0
        %446 = vmatprep.subr.mxu0 0.0
        %447 = vmatpush1.msra.mxu0 0.0
        %448 = vmatprep.subr.mxu0 0.0
        %449 = vmatpush1.msra.mxu0 0.0
        %450 = vmatprep.subr.mxu0 0.0
        %451 = vmatpush1.msra.mxu0 0.0
        %452 = vmatprep.subr.mxu0 0.0
        %453 = vmatpush1.msra.mxu0 0.0
        %454 = vmatprep.subr.mxu0 0.0
        %455 = vmatpush1.msra.mxu0 0.0
        %456 = vmatprep.subr.mxu0 0.0
        %457 = vmatpush1.msra.mxu0 0.0
        %458 = vmatprep.subr.mxu0 0.0
        %459 = vmatpush1.msra.mxu0 0.0
        %460 = vmatprep.subr.mxu0 0.0
        %461 = vmatpush1.msra.mxu0 0.0
        %462 = vmatprep.subr.mxu0 0.0
        %463 = vmatpush1.msra.mxu0 0.0
        %464 = vmatprep.mubr.f32.mxu0 0.0
        %465 = vmatmul.mubr.f32.gmra.mrb[0].mxu0 %v376
        %v466 = vpop.f32.mrb[0].mxu0
        %v467 = vadd.f32 %v398, %v466
        %v468 = vpop.f32.mrb[0].mxu0
        %469 = vdwg.mxu0
        %v470 = vmax.f32 %v467, 0.0
        %p471 = scmp.eq.s32.totalorder %s31, 0
        %p472 = scmp.eq.s32.totalorder %s32, 0
        %p473 = pnand %p471, %p472
        %p474 = pneg %p473
        // Predicated region
        $region61: #{tpu_custom_call.1} parent=47 // pred_check
          _
        $region62: #{tpu_custom_call.1} parent=47 // pred_check_branch
          %476 = sbr.rel (%p473) target = $region64
        $region63: #{tpu_custom_call.1} parent=47 // pred_region
          %477 = vst [vmem:[#allocation8] sm:$0x1] 0.0
          %478 = vst [vmem:[#allocation9] sm:$0x1] 0.0
        $region64: #{tpu_custom_call.1} parent=47 // pred_fallthru
          _
        // Predicated region
        $region65: #{tpu_custom_call.1} parent=47 // pred_check
          %p479 = pneg %p471
        $region66: #{tpu_custom_call.1} parent=47 // pred_check_branch
          %481 = sbr.rel (%p479) target = $region68
        $region67: #{tpu_custom_call.1} parent=47 // pred_region
          %v482 = vld [vmem:[#allocation8] sm:$0x1]
          %v483 = vrot.slane %v470, 4
          %v484 = vadd.f32 %v470, %v483
          %v485 = vrot.slane %v484, 2
          %v486 = vadd.f32 %v484, %v485
          %v487 = vrot.slane %v486, 1
          %v488 = vadd.f32 %v486, %v487
          %v489 = vadd.f32 %v482, %v488
          %490 = vst [vmem:[#allocation8] sm:$0x1] %v489
          %v491 = vld [vmem:[#allocation9] sm:$0x1]
          %v492 = vmul.f32 %v470, %v470
          %v493 = vrot.slane %v492, 4
          %v494 = vadd.f32 %v492, %v493
          %v495 = vrot.slane %v494, 2
          %v496 = vadd.f32 %v494, %v495
          %v497 = vrot.slane %v496, 1
          %v498 = vadd.f32 %v496, %v497
          %v499 = vadd.f32 %v491, %v498
          %500 = vst [vmem:[#allocation9] sm:$0x1] %v499
        $region68: #{tpu_custom_call.1} parent=47 // pred_fallthru
          _
        %p501 = scmp.eq.s32.totalorder %s31, 1
        // Predicated region
        $region69: #{tpu_custom_call.1} parent=47 // pred_check
          %p502 = pneg %p501
        $region70: #{tpu_custom_call.1} parent=47 // pred_check_branch
          %504 = sbr.rel (%p502) target = $region72
        $region71: #{tpu_custom_call.1} parent=47 // pred_region
          %v505 = vld [vmem:[#allocation8] sm:$0x1]
          %v506 = vmul.f32 %v505, 0.125
          %v507 = vld [vmem:[#allocation9] sm:$0x1]
          %v508 = vmul.f32 %v507, 0.125
          %v509 = vmul.f32 %v506, %v506
          %v510 = vsub.f32 %v508, %v509
          %v511 = vld [vmem:[%s3] sm:$0x1]
          %v512 = vadd.f32 %v510, 1e-05
          %v513 = vrsqrt.pop %v512
          %v514 = vmul.f32 %v511, %v513
          %v515 = vld [vmem:[%s4] sm:$0x1]
          %v516 = vmul.f32 %v506, %v514
          %v517 = vsub.f32 %v515, %v516
          %v519 = vlaneseq
          %v520 = vshrl.u32 %v519, 7
          %v521 = vsub.s32 0, %v520
          %v522 = vrot.slane %v514, %v521
          %v524 = vmul.f32 %v470, %v522
          %v526 = vlaneseq
          %v527 = vshrl.u32 %v526, 7
          %v528 = vsub.s32 0, %v527
          %v529 = vrot.slane %v517, %v528
          %v531 = vadd.f32 %v524, %v529
          %v532 = vld [vmem:[#allocation7] sm:$0xff]
          %v533 = vld [vmem:[#allocation7 + $0x8] sm:$0xff]
          %v534 = vld [vmem:[#allocation7 + $0x10] sm:$0xff]
          %v535 = vld [vmem:[#allocation7 + $0x18] sm:$0xff]
          %v536 = vld [vmem:[#allocation7 + $0x20] sm:$0xff]
          %v537 = vld [vmem:[#allocation7 + $0x28] sm:$0xff]
          %v538 = vld [vmem:[#allocation7 + $0x30] sm:$0xff]
          %v539 = vld [vmem:[#allocation7 + $0x38] sm:$0xff]
          %v540 = vld [vmem:[#allocation7 + $0x40] sm:$0xff]
          %v541 = vld [vmem:[#allocation7 + $0x48] sm:$0xff]
          %v542 = vld [vmem:[#allocation7 + $0x50] sm:$0xff]
          %v543 = vld [vmem:[#allocation7 + $0x58] sm:$0xff]
          %v544 = vld [vmem:[#allocation7 + $0x60] sm:$0xff]
          %v545 = vld [vmem:[#allocation7 + $0x68] sm:$0xff]
          %v546 = vld [vmem:[#allocation7 + $0x70] sm:$0xff]
          %v547 = vld [vmem:[#allocation7 + $0x78] sm:$0xff]
          %v548 = vld [vmem:[%s6] sm:$0x1]
          %v550 = vlaneseq
          %v551 = vshrl.u32 %v550, 7
          %v552 = vsub.s32 0, %v551
          %v553 = vrot.slane %v548, %v552
          %555 = vmatprep.subr.mxu0 0.0
          %556 = vmatpush1.msra.mxu0 %v532
          %557 = vmatprep.subr.mxu0 0.0
          %558 = vmatpush1.msra.mxu0 %v533
          %559 = vmatprep.subr.mxu0 0.0
          %560 = vmatpush1.msra.mxu0 %v534
          %561 = vmatprep.subr.mxu0 0.0
          %562 = vmatpush1.msra.mxu0 %v535
          %563 = vmatprep.subr.mxu0 0.0
          %564 = vmatpush1.msra.mxu0 %v536
          %565 = vmatprep.subr.mxu0 0.0
          %566 = vmatpush1.msra.mxu0 %v537
          %567 = vmatprep.subr.mxu0 0.0
          %568 = vmatpush1.msra.mxu0 %v538
          %569 = vmatprep.subr.mxu0 0.0
          %570 = vmatpush1.msra.mxu0 %v539
          %571 = vmatprep.subr.mxu0 0.0
          %572 = vmatpush1.msra.mxu0 %v540
          %573 = vmatprep.subr.mxu0 0.0
          %574 = vmatpush1.msra.mxu0 %v541
          %575 = vmatprep.subr.mxu0 0.0
          %576 = vmatpush1.msra.mxu0 %v542
          %577 = vmatprep.subr.mxu0 0.0
          %578 = vmatpush1.msra.mxu0 %v543
          %579 = vmatprep.subr.mxu0 0.0
          %580 = vmatpush1.msra.mxu0 %v544
          %581 = vmatprep.subr.mxu0 0.0
          %582 = vmatpush1.msra.mxu0 %v545
          %583 = vmatprep.subr.mxu0 0.0
          %584 = vmatpush1.msra.mxu0 %v546
          %585 = vmatprep.subr.mxu0 0.0
          %586 = vmatpush1.msra.mxu0 %v547
          %587 = vmatprep.subr.mxu0 0.0
          %588 = vmatpush1.msra.mxu0 0.0
          %589 = vmatprep.subr.mxu0 0.0
          %590 = vmatpush1.msra.mxu0 0.0
          %591 = vmatprep.subr.mxu0 0.0
          %592 = vmatpush1.msra.mxu0 0.0
          %593 = vmatprep.subr.mxu0 0.0
          %594 = vmatpush1.msra.mxu0 0.0
          %595 = vmatprep.subr.mxu0 0.0
          %596 = vmatpush1.msra.mxu0 0.0
          %597 = vmatprep.subr.mxu0 0.0
          %598 = vmatpush1.msra.mxu0 0.0
          %599 = vmatprep.subr.mxu0 0.0
          %600 = vmatpush1.msra.mxu0 0.0
          %601 = vmatprep.subr.mxu0 0.0
          %602 = vmatpush1.msra.mxu0 0.0
          %603 = vmatprep.subr.mxu0 0.0
          %604 = vmatpush1.msra.mxu0 0.0
          %605 = vmatprep.subr.mxu0 0.0
          %606 = vmatpush1.msra.mxu0 0.0
          %607 = vmatprep.subr.mxu0 0.0
          %608 = vmatpush1.msra.mxu0 0.0
          %609 = vmatprep.subr.mxu0 0.0
          %610 = vmatpush1.msra.mxu0 0.0
          %611 = vmatprep.subr.mxu0 0.0
          %612 = vmatpush1.msra.mxu0 0.0
          %613 = vmatprep.subr.mxu0 0.0
          %614 = vmatpush1.msra.mxu0 0.0
          %615 = vmatprep.subr.mxu0 0.0
          %616 = vmatpush1.msra.mxu0 0.0
          %617 = vmatprep.subr.mxu0 0.0
          %618 = vmatpush1.msra.mxu0 0.0
          %619 = vmatprep.mubr.f32.mxu0 0.0
          %620 = vmatmul.mubr.f32.gmra.mrb[0].mxu0 %v531
          %v621 = vpop.f32.mrb[0].mxu0
          %v622 = vadd.f32 %v553, %v621
          %v623 = vpop.f32.mrb[0].mxu0
          %624 = vdwg.mxu0
          %v625 = vmax.f32 %v622, 0.0
          // Predicated region
          $region73: #{tpu_custom_call.1} parent=71 // pred_check
            %p626 = pneg %p472
          $region74: #{tpu_custom_call.1} parent=71 // pred_check_branch
            %628 = sbr.rel (%p626) target = $region76
          $region75: #{tpu_custom_call.1} parent=71 // pred_region
            %629 = vst [vmem:[#allocation11] sm:$0x1] 0.0
            %630 = vst [vmem:[#allocation12] sm:$0x1] 0.0
          $region76: #{tpu_custom_call.1} parent=71 // pred_fallthru
            _
          %v631 = vld [vmem:[#allocation11] sm:$0x1]
          %v632 = vrot.slane %v625, 4
          %v633 = vadd.f32 %v625, %v632
          %v634 = vrot.slane %v633, 2
          %v635 = vadd.f32 %v633, %v634
          %v636 = vrot.slane %v635, 1
          %v637 = vadd.f32 %v635, %v636
          %v638 = vadd.f32 %v631, %v637
          %639 = vst [vmem:[#allocation11] sm:$0x1] %v638
          %v640 = vld [vmem:[#allocation12] sm:$0x1]
          %v641 = vmul.f32 %v625, %v625
          %v642 = vrot.slane %v641, 4
          %v643 = vadd.f32 %v641, %v642
          %v644 = vrot.slane %v643, 2
          %v645 = vadd.f32 %v643, %v644
          %v646 = vrot.slane %v645, 1
          %v647 = vadd.f32 %v645, %v646
          %v648 = vadd.f32 %v640, %v647
          %649 = vst [vmem:[#allocation12] sm:$0x1] %v648
        $region72: #{tpu_custom_call.1} parent=47 // pred_fallthru
          _
        // Predicated region
        $region77: #{tpu_custom_call.1} parent=47 // pred_check
          %p650 = pneg %p199
        $region78: #{tpu_custom_call.1} parent=47 // pred_check_branch
          %652 = sbr.rel (%p650) target = $region80
        $region79: #{tpu_custom_call.1} parent=47 // pred_region
          %s654 = ssub.s32 16, 16
          %655 = vsyncadd [#allocation4], %s654
          %s657 = sshll.u32 [#allocation8], 4
          %s658 = int_to_ptr.vmem [resolvable:$true] %s657
          %660 = dma.vmem_to_hbm [thread:$0]  %s658, 16, %s7, [#allocation4]
        $region80: #{tpu_custom_call.1} parent=47 // pred_fallthru
          _
        // Predicated region
        $region81: #{tpu_custom_call.1} parent=47 // pred_check
          %p661 = pneg %p220
        $region82: #{tpu_custom_call.1} parent=47 // pred_check_branch
          %663 = sbr.rel (%p661) target = $region84
        $region83: #{tpu_custom_call.1} parent=47 // pred_region
          %s665 = ssub.s32 16, 16
          %666 = vsyncadd [#allocation10], %s665
          %s668 = sshll.u32 [#allocation9], 4
          %s669 = int_to_ptr.vmem [resolvable:$true] %s668
          %671 = dma.vmem_to_hbm [thread:$0]  %s669, 16, %s8, [#allocation10]
        $region84: #{tpu_custom_call.1} parent=47 // pred_fallthru
          _
        // Predicated region
        $region85: #{tpu_custom_call.1} parent=47 // pred_check
          %p672 = pneg %p241
        $region86: #{tpu_custom_call.1} parent=47 // pred_check_branch
          %674 = sbr.rel (%p672) target = $region88
        $region87: #{tpu_custom_call.1} parent=47 // pred_region
          %s676 = ssub.s32 16, 16
          %677 = vsyncadd [#allocation10], %s676
          %s679 = sshll.u32 [#allocation11], 4
          %s680 = int_to_ptr.vmem [resolvable:$true] %s679
          %682 = dma.vmem_to_hbm [thread:$0]  %s680, 16, %s9, [#allocation10]
        $region88: #{tpu_custom_call.1} parent=47 // pred_fallthru
          _
        // Predicated region
        $region89: #{tpu_custom_call.1} parent=47 // pred_check
          %p683 = pneg %p262
        $region90: #{tpu_custom_call.1} parent=47 // pred_check_branch
          %685 = sbr.rel (%p683) target = $region92
        $region91: #{tpu_custom_call.1} parent=47 // pred_region
          %s687 = ssub.s32 16, 16
          %688 = vsyncadd [#allocation13], %s687
          %s690 = sshll.u32 [#allocation12], 4
          %s691 = int_to_ptr.vmem [resolvable:$true] %s690
          %693 = dma.vmem_to_hbm [thread:$0]  %s691, 16, %s10, [#allocation13]
        $region92: #{tpu_custom_call.1} parent=47 // pred_fallthru
          _
        // Predicated region
        $region93: #{tpu_custom_call.1} parent=47 // pred_check
          %p694 = pneg %p199
        $region94: #{tpu_custom_call.1} parent=47 // pred_check_branch
          %696 = sbr.rel (%p694) target = $region96
        $region95: #{tpu_custom_call.1} parent=47 // pred_region
          %697 = dma.done [#allocation4], 16
        $region96: #{tpu_custom_call.1} parent=47 // pred_fallthru
          _
        // Predicated region
        $region97: #{tpu_custom_call.1} parent=47 // pred_check
          %p698 = pneg %p220
        $region98: #{tpu_custom_call.1} parent=47 // pred_check_branch
          %700 = sbr.rel (%p698) target = $region100
        $region99: #{tpu_custom_call.1} parent=47 // pred_region
          %701 = dma.done [#allocation10], 16
        $region100: #{tpu_custom_call.1} parent=47 // pred_fallthru
          _
        // Predicated region
        $region101: #{tpu_custom_call.1} parent=47 // pred_check
          %p702 = pneg %p241
        $region102: #{tpu_custom_call.1} parent=47 // pred_check_branch
          %704 = sbr.rel (%p702) target = $region104
        $region103: #{tpu_custom_call.1} parent=47 // pred_region
          %705 = dma.done [#allocation10], 16
        $region104: #{tpu_custom_call.1} parent=47 // pred_fallthru
          _
        // Predicated region
        $region105: #{tpu_custom_call.1} parent=47 // pred_check
          %p706 = pneg %p262
        $region106: #{tpu_custom_call.1} parent=47 // pred_check_branch
          %708 = sbr.rel (%p706) target = $region108
        $region107: #{tpu_custom_call.1} parent=47 // pred_region
          %709 = dma.done [#allocation13], 16
        $region108: #{tpu_custom_call.1} parent=47 // pred_fallthru
          _
      $region48: #{tpu_custom_call.1} parent=5 // pred_fallthru
        _
      %p710 = scmp.le.s32.totalorder 2, %s22
      // Predicated region
      $region109: #{tpu_custom_call.1} parent=5 // pred_check
        %p711 = pneg %p710
      $region110: #{tpu_custom_call.1} parent=5 // pred_check_branch
        %713 = sbr.rel (%p711) target = $region112
      $region111: #{tpu_custom_call.1} parent=5 // pred_region
        %s714 = ssub.s32 %s22, 2
      $region112: #{tpu_custom_call.1} parent=5 // pred_fallthru
        _
    $region6: #{tpu_custom_call.1} parent=1 // loop_footer
      %s26 = sadd.s32 1, %s22
    $region7: #{tpu_custom_call.1} parent=1 // loop_footer_branch
      %21 = sbr.rel target = $region3
    $region8: #{tpu_custom_call.1} parent=1 // loop_exit
      _
    %715 = vsyncpa [#allocation3], 1
    %s716 = scalar_lea.sflag [#allocation3], 1
    %717 = vsyncpa %s716, 1
    %718 = vsyncpa [#allocation6], 1
    %719 = vsyncpa [#allocation4], 1
    %s720 = scalar_lea.sflag [#allocation4], 1
    %721 = vsyncpa %s720, 1
    %722 = vsyncpa [#allocation10], 1
    %723 = vsyncpa [#allocation13], 1

</llo_original>
